<compile_context>
chip_gen: v7x
topology: tpu7x:2x2x1
jax: 0.10.0
libtpu: 0.0.40
codegen_flags: <defaults>
</compile_context>

<pallas_src>
import functools

import jax
import jax.numpy as jnp
from jax.experimental import pallas as pl
from jax.experimental.pallas import tpu as pltpu


_LANE = 128
_SUBLANE = 8


def _round_up(x, m):
    return ((x + m - 1) // m) * m


def _cdiv(a, b):
    return -(-a // b)


def _vmem_capacity_bytes():
    """Per-core VMEM capacity (v5e/v6e: 128 MiB, v7x: 64 MiB per TC)."""
    try:
        info = pltpu.get_tpu_info()
        cap = int(getattr(info, "vmem_capacity_bytes", 0))
        if cap > 0:
            return cap
    except Exception:
        pass
    return 64 * 1024 * 1024  # conservative fallback (v7x per-TC VMEM)


def _choose_tiles(m, k, n_pad, n_out, budget, force_k_tile=None):
    """Pick (tm, tk, nk, mask_tail) so the per-step working set fits `budget`."""
    if force_k_tile is not None:
        assert force_k_tile % _LANE == 0
    w_bytes = k * n_pad * 2                                  # bf16 weight
    if force_k_tile is not None and force_k_tile < k:
        tk = int(force_k_tile)
    elif w_bytes > budget // 2 and k > _LANE:
        # K-tiled reduction so a huge weight never has to be fully resident.
        tk = max(_LANE, (budget // 2) // (n_pad * 2) // _LANE * _LANE)
        tk = min(tk, (k // _LANE) * _LANE)
    else:
        tk = k                                               # full K (common case)
    nk = _cdiv(k, tk)
    mask_tail = (k % tk) != 0

    # Weight has a constant row-block index -> single residency when nk == 1.
    w_bufs = 1 if nk == 1 else 2
    fixed = w_bufs * tk * n_pad * 2 + 2 * n_pad * 4          # weight + bias
    per_row = 2 * tk * 4 + 2 * n_out * 4 + n_pad * 4         # x + out (2 bufs) + acc
    # TODO(synk): add an N-tiling axis if input_feats ever grows so large that
    # even a single 128-row K tile of the weight exceeds the VMEM budget.
    tm = max(budget - fixed, per_row * _SUBLANE) // per_row
    tm = max(_SUBLANE, tm // _SUBLANE * _SUBLANE)
    tm = min(tm, 512)                                        # ~HBM-roofline knee
    # Keep >=2 row steps so the DMA/compute pipeline overlaps and v7x's two
    # TensorCores both get work on the "parallel" row axis.
    tm = min(tm, _round_up(_cdiv(m, 2), _SUBLANE))
    return tm, tk, nk, mask_tail


# ---------------------------------------------------------------------------
# Kernel body
# ---------------------------------------------------------------------------

def _linear_kernel(x_ref, w_ref, b_ref, o_ref, acc_ref, *, k_total, mask_tail):
    """acc += x_tile(bf16) @ w_tile(bf16) in f32; bias + store on last K step."""
    kk = pl.program_id(1)

    @pl.when(kk == 0)
    def _():
        acc_ref[...] = jnp.zeros_like(acc_ref)

    x = x_ref[...]
    w = w_ref[...]
    if mask_tail:
        # K does not divide the K tile: zero BOTH operands' out-of-range K
        # slice (zeroing only one is not NaN-safe: 0 * stale-NaN = NaN).
        tk = x.shape[-1]
        base = kk * tk
        col = base + jax.lax.broadcasted_iota(jnp.int32, x.shape, 1)
        x = jnp.where(col < k_total, x, 0.0)
        row = base + jax.lax.broadcasted_iota(jnp.int32, w.shape, 0)
        w = jnp.where(row < k_total, w, jnp.zeros_like(w))

    acc_ref[...] += jnp.dot(x.astype(jnp.bfloat16), w,
                            preferred_element_type=jnp.float32)

    @pl.when(kk == pl.num_programs(1) - 1)
    def _():
        y = acc_ref[...] + b_ref[...]                        # f32 epilogue
        o_ref[...] = y[:, : o_ref.shape[-1]].astype(o_ref.dtype)


# ---------------------------------------------------------------------------
# Wrapper
# ---------------------------------------------------------------------------

def pallas_linear(x2d, w_t, bias, n_out, *, force_k_tile=None, out_dtype=None):
    """Returns x2d @ w_t[:, :n_out] + bias[:, :n_out].

    x2d:  (M, K)      float32 or bfloat16 (bf16 is used as-is, no extra pass)
    w_t:  (K, N_pad)  bfloat16, N_pad % 128 == 0, zero-padded columns
    bias: (1, N_pad)  float32, zero-padded
    """
    m_in = x2d.shape[0]
    if m_in < _SUBLANE:
        # Tiny inputs (< one sublane tile of rows): pad rows up to 8 (a few
        # hundred bytes) instead of using a block larger than the array.
        x2d = jnp.pad(x2d, ((0, _SUBLANE - m_in), (0, 0)))

    m, k = x2d.shape
    k_w, n_pad = w_t.shape
    assert k_w == k and n_pad % _LANE == 0 and n_out <= n_pad
    assert bias.shape == (1, n_pad)
    assert w_t.dtype == jnp.bfloat16
    out_dtype = x2d.dtype if out_dtype is None else out_dtype

    cap = _vmem_capacity_bytes()
    tm, tk, nk, mask_tail = _choose_tiles(m, k, n_pad, n_out, cap // 4,
                                          force_k_tile)
    grid = (_cdiv(m, tm), nk)   # ragged trailing row block: masked on store

    kernel = functools.partial(_linear_kernel, k_total=k, mask_tail=mask_tail)
    cost = pl.CostEstimate(
        flops=2 * m * k * n_pad,
        transcendentals=0,
        bytes_accessed=(m * k * x2d.dtype.itemsize
                        + k * n_pad * 2 + n_pad * 4
                        + m * n_out * jnp.dtype(out_dtype).itemsize),
    )

    y = pl.pallas_call(
        kernel,
        out_shape=jax.ShapeDtypeStruct((m, n_out), out_dtype),
        grid_spec=pltpu.PrefetchScalarGridSpec(
            num_scalar_prefetch=0,
            grid=grid,
            in_specs=[
                pl.BlockSpec((tm, tk), lambda i, kk: (i, kk)),      # x tile
                pl.BlockSpec((tk, n_pad), lambda i, kk: (kk, 0)),   # weight K tile
                pl.BlockSpec((1, n_pad), lambda i, kk: (0, 0)),     # bias (resident)
            ],
            out_specs=pl.BlockSpec((tm, n_out), lambda i, kk: (i, 0)),
            scratch_shapes=[pltpu.VMEM((tm, n_pad), jnp.float32)],
        ),
        compiler_params=pltpu.CompilerParams(
            dimension_semantics=("parallel", "arbitrary"),
            vmem_limit_bytes=cap // 2,
        ),
        cost_estimate=cost,
    )(x2d, w_t, bias)

    return y if m_in == m else y[:m_in]


def _prepare_linear_params(w, b):
    """nn.Linear params (out,in)/(out,) -> transposed, lane-padded kernel copies."""
    out_f, in_f = w.shape
    n_pad = _round_up(out_f, _LANE)
    w_t = jnp.zeros((in_f, n_pad), jnp.bfloat16).at[:, :out_f].set(
        w.T.astype(jnp.bfloat16))
    b_p = jnp.zeros((1, n_pad), jnp.float32).at[:, :out_f].set(b)
    return w_t, b_p


# ---------------------------------------------------------------------------
# Module
# ---------------------------------------------------------------------------

class OutputProcessPallas:
    """JAX/Pallas re-implementation of ddbm.mrm.OutputProcess forward."""

    def __init__(self, data_rep, input_feats, latent_dim, njoints, nfeats=1,
                 seed=0):
        self.data_rep = data_rep
        self.input_feats = input_feats
        self.latent_dim = latent_dim
        self.njoints = njoints
        self.nfeats = nfeats

        # Deterministic synthetic parameters (nn.Linear shapes: weight (out,in),
        # bias (out,)).  f32 masters kept for reference checks; kernel copies
        # are pre-transposed, lane-padded, bf16.
        key = jax.random.PRNGKey(seed)
        k1, k2, k3, k4 = jax.random.split(key, 4)
        lim = 1.0 / (latent_dim ** 0.5)
        self.pose_w = jax.random.uniform(
            k1, (input_feats, latent_dim), jnp.float32, -lim, lim)
        self.pose_b = jax.random.uniform(
            k2, (input_feats,), jnp.float32, -lim, lim)
        self.pose_wt, self.pose_bias = _prepare_linear_params(
            self.pose_w, self.pose_b)
        if data_rep == 'rot_vel':
            self.vel_w = jax.random.uniform(
                k3, (input_feats, latent_dim), jnp.float32, -lim, lim)
            self.vel_b = jax.random.uniform(
                k4, (input_feats,), jnp.float32, -lim, lim)
            self.vel_wt, self.vel_bias = _prepare_linear_params(
                self.vel_w, self.vel_b)

    def __call__(self, output):
        nframes, bs, d = output.shape
        assert d == self.latent_dim
        F = self.input_feats
        if self.data_rep in ('rot6d', 'xyz', 'hml_vec'):
            y = pallas_linear(output.reshape(nframes * bs, d),
                              self.pose_wt, self.pose_bias, F)
            return y.reshape(nframes, bs, F)
        elif self.data_rep == 'rot_vel':
            # One big row-tiled velFinal matmul over ALL frames (frame 0's vel
            # rows are recomputed below and then overwritten -- bs*K wasted
            # flops, but no (nframes-1)*bs*K input-slice copy and no concat
            # pass), then a tiny poseFinal matmul for frame 0 merged with a
            # dynamic-update-slice.
            y = pallas_linear(output.reshape(nframes * bs, d),
                              self.vel_wt, self.vel_bias, F)
            y = y.reshape(nframes, bs, F)
            y0 = pallas_linear(output[0], self.pose_wt, self.pose_bias, F)
            return y.at[0].set(y0)
        else:
            raise ValueError(self.data_rep)


if __name__ == "__main__":
    # Small shapes consistent with the module's forward:
    # output: (nframes, bs, latent_dim)
    nframes, bs, latent_dim = 8, 2, 32
    njoints, nfeats = 24, 1
    input_feats = njoints * nfeats

    key = jax.random.PRNGKey(0)
    x = jax.random.normal(key, (nframes, bs, latent_dim), jnp.float32)

    def _bf16(a):  # reference uses the same bf16-rounded operands as the MXU
        return a.astype(jnp.bfloat16).astype(jnp.float32)

    # Branch 1: 'rot6d' -- single poseFinal Linear.
    mod = OutputProcessPallas('rot6d', input_feats, latent_dim, njoints, nfeats)
    y = jax.block_until_ready(mod(x))
    assert y.shape == (nframes, bs, input_feats)
    ref = _bf16(x) @ _bf16(mod.pose_w).T + mod.pose_b
    assert jnp.allclose(y, ref, atol=1e-4, rtol=1e-4)
    assert jnp.allclose(y, x @ mod.pose_w.T + mod.pose_b, atol=5e-2, rtol=5e-2)

    # Branch 2: 'rot_vel' -- poseFinal on frame 0, velFinal on frames 1:.
    mod_rv = OutputProcessPallas('rot_vel', input_feats, latent_dim, njoints,
                                 nfeats, seed=1)
    y_rv = jax.block_until_ready(mod_rv(x))
    assert y_rv.shape == (nframes, bs, input_feats)
    ref_rv = jnp.concatenate(
        (_bf16(x[0:1]) @ _bf16(mod_rv.pose_w).T + mod_rv.pose_b,
         _bf16(x[1:]) @ _bf16(mod_rv.vel_w).T + mod_rv.vel_b), axis=0)
    assert jnp.allclose(y_rv, ref_rv, atol=1e-4, rtol=1e-4)

    # Branch 3: forced K-tiled accumulator path (nk=2, masked K tail, ragged
    # trailing row block) to keep the large-weight path exercised.
    M2, K2, F2 = 40, 160, 263
    ka, kb, kc = jax.random.split(jax.random.PRNGKey(2), 3)
    x2 = jax.random.normal(ka, (M2, K2), jnp.float32)
    w2 = jax.random.uniform(kb, (F2, K2), jnp.float32, -0.1, 0.1)
    b2 = jax.random.uniform(kc, (F2,), jnp.float32, -0.1, 0.1)
    w2_t, b2_p = _prepare_linear_params(w2, b2)
    y2 = jax.block_until_ready(
        pallas_linear(x2, w2_t, b2_p, F2, force_k_tile=128))
    ref2 = jnp.dot(_bf16(x2), _bf16(w2).T,
                   precision=jax.lax.Precision.HIGHEST) + b2
    assert y2.shape == (M2, F2)
    assert jnp.allclose(y2, ref2, atol=1e-3, rtol=1e-3)

    print("KERNEL_OK")
</pallas_src>

<mosaic_0001>
module attributes {stable_mosaic.version = 11 : i64} {
  func.func @_linear_kernel(%arg0: i32, %arg1: i32, %arg2: memref<8x32xf32, #tpu.memory_space<vmem>>, %arg3: memref<32x128xbf16, #tpu.memory_space<vmem>>, %arg4: memref<1x128xf32, #tpu.memory_space<vmem>>, %arg5: memref<8x24xf32, #tpu.memory_space<vmem>>, %arg6: memref<8x128xf32, #tpu.memory_space<vmem>>) attributes {dimension_semantics = [#tpu.dimension_semantics<parallel>, #tpu.dimension_semantics<arbitrary>], iteration_bounds = array<i64: 2, 1>, scalar_prefetch = 0 : i64, scratch_operands = 1 : i64, tpu.core_type = #tpu.core_type<tc>, window_params = [{transform_indices = @transform_0, window_bounds = array<i64: 8, 32>}, {transform_indices = @transform_1, window_bounds = array<i64: 32, 128>}, {pipeline_mode = #tpu.pipeline_mode<synchronous>, transform_indices = @transform_2, window_bounds = array<i64: 1, 128>}, {transform_indices = @transform_3, window_bounds = array<i64: 8, 24>}]} {
    %c0_i32 = arith.constant 0 : i32
    %0 = arith.cmpi eq, %arg1, %c0_i32 : i32
    %1 = arith.extui %0 : i1 to i32
    %c0_i32_0 = arith.constant 0 : i32
    %2 = arith.cmpi ne, %1, %c0_i32_0 : i32
    scf.if %2 {
      %cst_10 = arith.constant 0.000000e+00 : f32
      %13 = vector.broadcast %cst_10 : f32 to vector<8x128xf32>
      %c0_11 = arith.constant 0 : index
      %c0_12 = arith.constant 0 : index
      %14 = vector.load %arg6[%c0_11, %c0_12] : memref<8x128xf32, #tpu.memory_space<vmem>>, vector<8x128xf32>
      tpu.vector_store %arg6[%c0_11, %c0_12], %13 {strides = array<i32>} : memref<8x128xf32, #tpu.memory_space<vmem>>, vector<8x128xf32>,
    } else {
    }
    %c0 = arith.constant 0 : index
    %c0_1 = arith.constant 0 : index
    %3 = vector.load %arg2[%c0, %c0_1] : memref<8x32xf32, #tpu.memory_space<vmem>>, vector<8x32xf32>
    %c0_2 = arith.constant 0 : index
    %c0_3 = arith.constant 0 : index
    %4 = vector.load %arg3[%c0_2, %c0_3] : memref<32x128xbf16, #tpu.memory_space<vmem>>, vector<32x128xbf16>
    %c0_4 = arith.constant 0 : index
    %c0_5 = arith.constant 0 : index
    %5 = vector.load %arg6[%c0_4, %c0_5] : memref<8x128xf32, #tpu.memory_space<vmem>>, vector<8x128xf32>
    %6 = arith.truncf %3 : vector<8x32xf32> to vector<8x32xbf16>
    %cst = arith.constant dense<0.000000e+00> : vector<8x128xf32>
    %7 = tpu.matmul %6, %4, %cst {dimension_numbers = #tpu.dot_dimension_numbers<[1], [0], [0], [1], [0, 0, 1, 1], [], []>} : vector<8x32xbf16>, vector<32x128xbf16>, vector<8x128xf32> -> vector<8x128xf32>
    %8 = arith.addf %5, %7 : vector<8x128xf32>
    %c0_6 = arith.constant 0 : index
    %c0_7 = arith.constant 0 : index
    %9 = vector.load %arg6[%c0_6, %c0_7] : memref<8x128xf32, #tpu.memory_space<vmem>>, vector<8x128xf32>
    tpu.vector_store %arg6[%c0_6, %c0_7], %8 {strides = array<i32>} : memref<8x128xf32, #tpu.memory_space<vmem>>, vector<8x128xf32>,
    %c0_i32_8 = arith.constant 0 : i32
    %10 = arith.cmpi eq, %arg1, %c0_i32_8 : i32
    %11 = arith.extui %10 : i1 to i32
    %c0_i32_9 = arith.constant 0 : i32
    %12 = arith.cmpi ne, %11, %c0_i32_9 : i32
    scf.if %12 {
      %c0_10 = arith.constant 0 : index
      %c0_11 = arith.constant 0 : index
      %13 = vector.load %arg6[%c0_10, %c0_11] : memref<8x128xf32, #tpu.memory_space<vmem>>, vector<8x128xf32>
      %c0_12 = arith.constant 0 : index
      %c0_13 = arith.constant 0 : index
      %14 = vector.load %arg4[%c0_12, %c0_13] : memref<1x128xf32, #tpu.memory_space<vmem>>, vector<1x128xf32>
      %15 = vector.broadcast %14 : vector<1x128xf32> to vector<8x128xf32>
      %16 = arith.addf %13, %15 : vector<8x128xf32>
      %17 = vector.extract_strided_slice %16 {offsets = [0, 0], sizes = [8, 24], strides = [1, 1]} : vector<8x128xf32> to vector<8x24xf32>
      %c0_14 = arith.constant 0 : index
      %c0_15 = arith.constant 0 : index
      %18 = vector.load %arg5[%c0_14, %c0_15] : memref<8x24xf32, #tpu.memory_space<vmem>>, vector<8x24xf32>
      tpu.vector_store %arg5[%c0_14, %c0_15], %17 {strides = array<i32>} : memref<8x24xf32, #tpu.memory_space<vmem>>, vector<8x24xf32>,
    } else {
    }
    return
  }
  func.func @transform_0(%arg0: i32, %arg1: i32) -> (i32, i32) {
    %c0_i32 = arith.constant 0 : i32
    return %arg0, %arg1 : i32, i32
  }
  func.func @transform_1(%arg0: i32, %arg1: i32) -> (i32, i32) {
    %c0_i32 = arith.constant 0 : i32
    %c0_i32_0 = arith.constant 0 : i32
    return %arg1, %c0_i32 : i32, i32
  }
  func.func @transform_2(%arg0: i32, %arg1: i32) -> (i32, i32) {
    %c0_i32 = arith.constant 0 : i32
    %c0_i32_0 = arith.constant 0 : i32
    %c0_i32_1 = arith.constant 0 : i32
    return %c0_i32, %c0_i32_0 : i32, i32
  }
  func.func @transform_3(%arg0: i32, %arg1: i32) -> (i32, i32) {
    %c0_i32 = arith.constant 0 : i32
    %c0_i32_0 = arith.constant 0 : i32
    return %arg0, %c0_i32 : i32, i32
  }
}

</mosaic_0001>

<llo_original>
// kernel: tpu_custom_call.1
$region0: #{tpu_custom_call.1}
  #allocation0 [shape = 'u32[]', space=smem, size = 0x4, offset = 0x4, fixed_abs, tag = 'smem constant byte address 0x4 - core index']
  #allocation1 [shape = 'u32[144,128]{1,0:T(1,128)}', space=vmem, size = 0x12000, scoped, tag = 'internal scratch']
  #allocation2 [shape = 'f32[8,128]{1,0:T(8,128)}', space=vmem, size = 0x1000, scoped, tag = 'scratch operand']
  %s0 = inlined_call_operand.hbm [shape: f32[16,32], index: 0, kind: input, shape index: {}]
  %s1 = inlined_call_operand.hbm [shape: bf16[32,128], index: 1, kind: input, shape index: {}]
  %s2 = inlined_call_operand.vmem [shape: f32[1,128], index: 2, kind: input, shape index: {}]
  %s3 = inlined_call_operand.hbm [shape: f32[16,24], index: 3, kind: output, shape index: {}]
  %s4 = sld [smem:[#allocation0]]
  $region61: #{tpu_custom_call.1} parent=0
    _
  %s6 = ssub.s32 1, %s4
  %s7 = scalar_select 0, %s6, %s4
  $region1: #{tpu_custom_call.1} parent=0
    #allocation3 [shape = 'u8[8192]{0}', space=vmem, size = 0x2000, scoped, tag = 'input window, operand 0']
    #allocation4 [shape = 's32[2]{0}', space=sflag, size = 0x8, scoped, tag = 'scoped memory for tpu_custom_call.1']
    #allocation5 [shape = 's32[2]{0}', space=sflag, size = 0x8, scoped, tag = 'scoped memory for tpu_custom_call.1']
    #allocation6 [shape = 'u8[8192]{0}', space=vmem, size = 0x2000, scoped, tag = 'input window, operand 1, single buffered']
    #allocation7 [shape = 's32[1]{0}', space=sflag, size = 0x4, scoped, tag = 'scoped memory for tpu_custom_call.1']
    #allocation8 [shape = 'u8[8192]{0}', space=vmem, size = 0x2000, scoped, tag = 'output window, operand 0']
    %8 = vsyncpa [#allocation4], 0
    %s9 = scalar_lea.sflag [#allocation4], 1
    %10 = vsyncpa %s9, 0
    %11 = vsyncpa [#allocation7], 0
    %12 = vsyncpa [#allocation5], 0
    %s13 = scalar_lea.sflag [#allocation5], 1
    %14 = vsyncpa %s13, 0
    loop: start=0, step=1, limit=4
    $region2: #{tpu_custom_call.1} parent=1 // loop_pre_header
      _
    $region3: #{tpu_custom_call.1} parent=1 // loop_header
      %s16 = sphi 0, %s20
      %p17 = scmp.ge.s32.totalorder %s16, 4
      %s23 = sphi 0, %s35
      %s24 = sphi 0, %s31
      %s25 = sphi 0, %s23
      %s26 = sphi 0, %s24
      %s27 = sphi 0, %s25
      %s28 = sphi 0, %s26
      %s40 = sphi 0, %s42
      %s43 = sphi 0, %s40
      %s44 = sphi 0, %s43
      %s60 = sphi 0, %s44
      %s66 = sphi 0, %s68
      %s69 = sphi 0, %s66
      %s70 = sphi 0, %s69
      %s86 = sphi 0, %s70
      %s90 = sphi 0, %s90
      %s92 = sphi 0, %s90
      %s93 = sphi 0, %s92
      %s107 = sphi 0, %s93
      %s113 = sphi 0, %s115
      %s116 = sphi 0, %s113
      %s117 = sphi 0, %s116
      %s133 = sphi 0, %s117
    $region4: #{tpu_custom_call.1} parent=1 // loop_header_branch
      %19 = sbr.rel (%p17) target = $region8
    $region5: #{tpu_custom_call.1} parent=1 // loop_body
      %s21 = ssub.s32 %s16, 1
      %s22 = ssub.s32 %s16, 2
      %s29 = sadd.s32 1, %s24
      %p30 = scmp.ge.s32.totalorder %s29, 1
      %s31 = scalar_select %p30, 0, %s29
      %s32 = sadd.s32 1, %s23
      %s33 = scalar_select %p30, %s32, %s23
      %p34 = scmp.ge.s32.totalorder %s33, 2
      %s35 = scalar_select %p34, 0, %s33
      %s36 = ssub.s32 %s23, %s35
      %s37 = ssub.s32 %s24, %s31
      %s38 = sor.u32 %s36, %s37
      %p39 = scmp.eq.s32.totalorder %s38, 0
      %s41 = sadd.s32 %s40, 1
      %s42 = scalar_select %p39, %s40, %s41
      %p45 = pneg %p39
      %p46 = scmp.eq.s32.totalorder %s16, 1
      %p47 = por %p45, %p46
      %p48 = scmp.ne.s32.totalorder %s40, %s43
      %p49 = scmp.eq.s32.totalorder %s16, 0
      %p50 = por %p48, %p49
      %p51 = scmp.ne.s32.totalorder %s40, %s43
      %p52 = scmp.eq.s32.totalorder %s21, 1
      %p53 = por %p51, %p52
      %p54 = scmp.ne.s32.totalorder %s43, %s44
      %p55 = scmp.eq.s32.totalorder %s21, 0
      %p56 = por %p54, %p55
      %p57 = scmp.ne.s32.totalorder %s43, %s44
      %p58 = scmp.eq.s32.totalorder %s22, 1
      %p59 = por %p57, %p58
      %p61 = scmp.ne.s32.totalorder %s44, %s60
      %p62 = scmp.eq.s32.totalorder %s22, 0
      %p63 = por %p61, %p62
      %s64 = ssub.s32 %s24, %s31
      %p65 = scmp.eq.s32.totalorder %s64, 0
      %s67 = sadd.s32 %s66, 1
      %s68 = scalar_select %p65, %s66, %s67
      %p71 = pneg %p65
      %p72 = scmp.eq.s32.totalorder %s16, 1
      %p73 = por %p71, %p72
      %p74 = scmp.ne.s32.totalorder %s66, %s69
      %p75 = scmp.eq.s32.totalorder %s16, 0
      %p76 = por %p74, %p75
      %p77 = scmp.ne.s32.totalorder %s66, %s69
      %p78 = scmp.eq.s32.totalorder %s21, 1
      %p79 = por %p77, %p78
      %p80 = scmp.ne.s32.totalorder %s69, %s70
      %p81 = scmp.eq.s32.totalorder %s21, 0
      %p82 = por %p80, %p81
      %p83 = scmp.ne.s32.totalorder %s69, %s70
      %p84 = scmp.eq.s32.totalorder %s22, 1
      %p85 = por %p83, %p84
      %p87 = scmp.ne.s32.totalorder %s70, %s86
      %p88 = scmp.eq.s32.totalorder %s22, 0
      %p89 = por %p87, %p88
      %s91 = sadd.s32 %s90, 1
      %p94 = scmp.eq.s32.totalorder %s16, 1
      %p95 = scmp.ne.s32.totalorder %s90, %s92
      %p96 = scmp.eq.s32.totalorder %s16, 0
      %p97 = por %p95, %p96
      %p98 = scmp.ne.s32.totalorder %s90, %s92
      %p99 = scmp.eq.s32.totalorder %s21, 1
      %p100 = por %p98, %p99
      %p101 = scmp.ne.s32.totalorder %s92, %s93
      %p102 = scmp.eq.s32.totalorder %s21, 0
      %p103 = por %p101, %p102
      %p104 = scmp.ne.s32.totalorder %s92, %s93
      %p105 = scmp.eq.s32.totalorder %s22, 1
      %p106 = por %p104, %p105
      %p108 = scmp.ne.s32.totalorder %s93, %s107
      %p109 = scmp.eq.s32.totalorder %s22, 0
      %p110 = por %p108, %p109
      %s111 = ssub.s32 %s23, %s35
      %p112 = scmp.eq.s32.totalorder %s111, 0
      %s114 = sadd.s32 %s113, 1
      %s115 = scalar_select %p112, %s113, %s114
      %p118 = pneg %p112
      %p119 = scmp.eq.s32.totalorder %s16, 1
      %p120 = por %p118, %p119
      %p121 = scmp.ne.s32.totalorder %s113, %s116
      %p122 = scmp.eq.s32.totalorder %s16, 0
      %p123 = por %p121, %p122
      %p124 = scmp.ne.s32.totalorder %s113, %s116
      %p125 = scmp.eq.s32.totalorder %s21, 1
      %p126 = por %p124, %p125
      %p127 = scmp.ne.s32.totalorder %s116, %s117
      %p128 = scmp.eq.s32.totalorder %s21, 0
      %p129 = por %p127, %p128
      %p130 = scmp.ne.s32.totalorder %s116, %s117
      %p131 = scmp.eq.s32.totalorder %s22, 1
      %p132 = por %p130, %p131
      %p134 = scmp.ne.s32.totalorder %s117, %s133
      %p135 = scmp.eq.s32.totalorder %s22, 0
      %p136 = por %p134, %p135
      %p137 = scmp.le.s32.totalorder 1, %s16
      %p138 = scmp.lt.s32.totalorder %s16, 3
      %p139 = pnand %p137, %p138
      %p140 = pneg %p139
      // Predicated region
      $region9: #{tpu_custom_call.1} parent=5 // pred_check
        _
      $region10: #{tpu_custom_call.1} parent=5 // pred_check_branch
        %142 = sbr.rel (%p139) target = $region12
      $region11: #{tpu_custom_call.1} parent=5 // pred_region
        %s143 = ssub.s32 %s16, 1
        // Predicated region
        $region13: #{tpu_custom_call.1} parent=11 // pred_check
          %p144 = pneg %p82
        $region14: #{tpu_custom_call.1} parent=11 // pred_check_branch
          %146 = sbr.rel (%p144) target = $region16
        $region15: #{tpu_custom_call.1} parent=11 // pred_region
          %s147 = smul.u32 4, %s26
          %s149 = ssub.s32 256, 256
          %150 = vsyncadd [#allocation7], %s149
          %s151 = smul.addr %s147, 64
          %s152 = scalar_lea.hbm %s1, %s151
          %s153 = sshll.u32 [#allocation6], 4
          %s154 = int_to_ptr.vmem [resolvable:$true] %s153
          %159 = dma.hbm_to_vmem [thread:$0]  %s152, 256, %s154, [#allocation7], 64, 64, 4
        $region16: #{tpu_custom_call.1} parent=11 // pred_fallthru
          _
        // Predicated region
        $region17: #{tpu_custom_call.1} parent=11 // pred_check
          %p160 = pneg %p103
        $region18: #{tpu_custom_call.1} parent=11 // pred_check_branch
          %162 = sbr.rel (%p160) target = $region20
        $region19: #{tpu_custom_call.1} parent=11 // pred_region
          _
        $region20: #{tpu_custom_call.1} parent=11 // pred_fallthru
          _
      $region12: #{tpu_custom_call.1} parent=5 // pred_fallthru
        _
      %p163 = scmp.lt.s32.totalorder %s16, 2
      // Predicated region
      $region21: #{tpu_custom_call.1} parent=5 // pred_check
        %p164 = pneg %p163
      $region22: #{tpu_custom_call.1} parent=5 // pred_check_branch
        %166 = sbr.rel (%p164) target = $region24
      $region23: #{tpu_custom_call.1} parent=5 // pred_region
        // Predicated region
        $region25: #{tpu_custom_call.1} parent=23 // pred_check
          %p167 = pneg %p50
        $region26: #{tpu_custom_call.1} parent=23 // pred_check_branch
          %169 = sbr.rel (%p167) target = $region28
        $region27: #{tpu_custom_call.1} parent=23 // pred_region
          %s170 = sand.u32 %s40, 1
          %s171 = scalar_lea.sflag [#allocation4], %s170
          %s172 = sand.u32 %s40, 1
          %s173 = smul.addr %s172, 8
          %s174 = scalar_lea.vmem [#allocation3], %s173
          %s176 = ssub.s32 128, 128
          %177 = vsyncadd %s171, %s176
          %s178 = sadd.s32 %s24, %s23
          %s179 = smul.addr %s178, 128
          %s180 = scalar_lea.hbm %s0, %s179
          %s182 = sshll.u32 %s174, 4
          %s183 = int_to_ptr.vmem [resolvable:$true] %s182
          %185 = dma.hbm_to_vmem [thread:$0]  %s180, 128, %s183, %s171
        $region28: #{tpu_custom_call.1} parent=23 // pred_fallthru
          _
      $region24: #{tpu_custom_call.1} parent=5 // pred_fallthru
        _
      %p186 = scmp.le.s32.totalorder 1, %s16
      %p187 = scmp.lt.s32.totalorder %s16, 3
      %p188 = pnand %p186, %p187
      %p189 = pneg %p188
      // Predicated region
      $region29: #{tpu_custom_call.1} parent=5 // pred_check
        _
      $region30: #{tpu_custom_call.1} parent=5 // pred_check_branch
        %191 = sbr.rel (%p188) target = $region32
      $region31: #{tpu_custom_call.1} parent=5 // pred_region
        %s192 = ssub.s32 %s16, 1
        %s193 = sand.u32 %s43, 1
        %s194 = scalar_lea.sflag [#allocation4], %s193
        %s195 = sand.u32 %s43, 1
        %s196 = smul.addr %s195, 8
        %s197 = scalar_lea.vmem [#allocation3], %s196
        // Predicated region
        $region33: #{tpu_custom_call.1} parent=31 // pred_check
          %p198 = pneg %p56
        $region34: #{tpu_custom_call.1} parent=31 // pred_check_branch
          %200 = sbr.rel (%p198) target = $region36
        $region35: #{tpu_custom_call.1} parent=31 // pred_region
          %201 = dma.done %s194, 128
        $region36: #{tpu_custom_call.1} parent=31 // pred_fallthru
          _
        // Predicated region
        $region37: #{tpu_custom_call.1} parent=31 // pred_check
          %p202 = pneg %p82
        $region38: #{tpu_custom_call.1} parent=31 // pred_check_branch
          %204 = sbr.rel (%p202) target = $region40
        $region39: #{tpu_custom_call.1} parent=31 // pred_region
          %205 = dma.done [#allocation7], 256
        $region40: #{tpu_custom_call.1} parent=31 // pred_fallthru
          _
        %s206 = sand.u32 %s43, 1
        %s207 = scalar_lea.sflag [#allocation4], %s206
        %s208 = sand.u32 %s43, 1
        %s209 = smul.addr %s208, 8
        %s210 = scalar_lea.vmem [#allocation3], %s209
        %p211 = pneg %p56
        %p212 = pneg %p53
        %p213 = pneg %p82
        %p214 = pneg %p79
        %p215 = pneg %p103
        %p216 = pneg %p100
        %p217 = pneg %p129
        %p218 = pneg %p126
        %s219 = sand.u32 %s116, 1
        %s220 = scalar_lea.sflag [#allocation5], %s219
        %s221 = sand.u32 %s116, 1
        %s222 = smul.addr %s221, 8
        %s223 = scalar_lea.vmem [#allocation8], %s222
        %s224 = smul.u32 4, %s26
        %p226 = scmp.eq.s32.totalorder %s26, 0
        // Predicated region
        $region41: #{tpu_custom_call.1} parent=31 // pred_check
          %p227 = pneg %p226
        $region42: #{tpu_custom_call.1} parent=31 // pred_check_branch
          %229 = sbr.rel (%p227) target = $region44
        $region43: #{tpu_custom_call.1} parent=31 // pred_region
          %230 = vst [vmem:[#allocation2] sm:$0xff] 0.0
        $region44: #{tpu_custom_call.1} parent=31 // pred_fallthru
          _
        %v231 = vld [vmem:[%s197] sm:$0xff]
        %v232 = vld [vmem:[#allocation6] sm:$0xf]
        %v233 = vld [vmem:[#allocation6 + $0x4] sm:$0xf]
        %v234 = vld [vmem:[#allocation6 + $0x8] sm:$0xf]
        %v235 = vld [vmem:[#allocation6 + $0xc] sm:$0xf]
        %v236 = vld [vmem:[#allocation2] sm:$0xff]
        %v237 = vpack.c.bf16 %v231, %v231
        %v242 = vunpack.c.l.b16 %v232
        %v243 = vunpack.c.l.b16 %v233
        %v244 = vunpack.c.l.b16 %v234
        %v245 = vunpack.c.l.b16 %v235
        %v246 = vpack.c.b16 %v243, %v242
        %v247 = vpack.c.b16 %v245, %v244
        %vm250 = vcmask 261120
        %v252 = vsel %vm250, %v237, 0
        %254 = vmatprep.subr.bf16.mxu0 0
        %255 = vmatpush1.bf16.msra.mxu0 %v246
        %256 = vmatprep.subr.bf16.mxu0 0
        %257 = vmatpush1.bf16.msra.mxu0 %v247
        %258 = vmatprep.subr.bf16.mxu0 0
        %259 = vmatpush1.bf16.msra.mxu0 0
        %260 = vmatprep.subr.bf16.mxu0 0
        %261 = vmatpush1.bf16.msra.mxu0 0
        %262 = vmatprep.subr.bf16.mxu0 0
        %263 = vmatpush1.bf16.msra.mxu0 0
        %264 = vmatprep.subr.bf16.mxu0 0
        %265 = vmatpush1.bf16.msra.mxu0 0
        %266 = vmatprep.subr.bf16.mxu0 0
        %267 = vmatpush1.bf16.msra.mxu0 0
        %268 = vmatprep.subr.bf16.mxu0 0
        %269 = vmatpush1.bf16.msra.mxu0 0
        %270 = vmatprep.subr.bf16.mxu0 0
        %271 = vmatpush1.bf16.msra.mxu0 0
        %272 = vmatprep.subr.bf16.mxu0 0
        %273 = vmatpush1.bf16.msra.mxu0 0
        %274 = vmatprep.subr.bf16.mxu0 0
        %275 = vmatpush1.bf16.msra.mxu0 0
        %276 = vmatprep.subr.bf16.mxu0 0
        %277 = vmatpush1.bf16.msra.mxu0 0
        %278 = vmatprep.subr.bf16.mxu0 0
        %279 = vmatpush1.bf16.msra.mxu0 0
        %280 = vmatprep.subr.bf16.mxu0 0
        %281 = vmatpush1.bf16.msra.mxu0 0
        %282 = vmatprep.subr.bf16.mxu0 0
        %283 = vmatpush1.bf16.msra.mxu0 0
        %284 = vmatprep.subr.bf16.mxu0 0
        %285 = vmatpush1.bf16.msra.mxu0 0
        %286 = vmatprep.mubr.bf16.mxu0 0
        %287 = vmatmul.mubr.bf16.gmra.mrb[0].mxu0 %v252
        %v288 = vpop.f32.mrb[0].mxu0
        %v289 = vadd.f32 0.0, %v288
        %v290 = vpop.f32.mrb[0].mxu0
        %v291 = vpop.f32.mrb[0].mxu0
        %v292 = vpop.f32.mrb[0].mxu0
        %293 = vdwg.mxu0
        %v294 = vadd.f32 %v236, %v289
        %295 = vst [vmem:[#allocation2] sm:$0xff] %v294
        // Predicated region
        $region45: #{tpu_custom_call.1} parent=31 // pred_check
          %p296 = pneg %p226
        $region46: #{tpu_custom_call.1} parent=31 // pred_check_branch
          %298 = sbr.rel (%p296) target = $region48
        $region47: #{tpu_custom_call.1} parent=31 // pred_region
          %v299 = vld [vmem:[#allocation2] sm:$0xff]
          %v300 = vld [vmem:[%s2] sm:$0x1]
          %v302 = vlaneseq
          %v303 = vshrl.u32 %v302, 7
          %v304 = vsub.s32 0, %v303
          %v305 = vrot.slane %v300, %v304
          %v307 = vadd.f32 %v299, %v305
          %vm308 = vcmask 195584
          %309 = vst.msk [vmem:[%s223] sm:$0xff] %vm308, %v307
        $region48: #{tpu_custom_call.1} parent=31 // pred_fallthru
          _
        %s310 = sand.u32 %s116, 1
        %s311 = scalar_lea.sflag [#allocation5], %s310
        %s312 = sand.u32 %s116, 1
        %s313 = smul.addr %s312, 8
        %s314 = scalar_lea.vmem [#allocation8], %s313
        // Predicated region
        $region49: #{tpu_custom_call.1} parent=31 // pred_check
          %p315 = pneg %p126
        $region50: #{tpu_custom_call.1} parent=31 // pred_check_branch
          %317 = sbr.rel (%p315) target = $region52
        $region51: #{tpu_custom_call.1} parent=31 // pred_region
          %s319 = ssub.s32 128, 128
          %320 = vsyncadd %s311, %s319
          %s321 = smul.addr %s25, 128
          %s322 = scalar_lea.hbm %s3, %s321
          %s324 = sshll.u32 %s314, 4
          %s325 = int_to_ptr.vmem [resolvable:$true] %s324
          %327 = dma.vmem_to_hbm [thread:$0]  %s325, 128, %s322, %s311
        $region52: #{tpu_custom_call.1} parent=31 // pred_fallthru
          _
      $region32: #{tpu_custom_call.1} parent=5 // pred_fallthru
        _
      %p328 = scmp.le.s32.totalorder 2, %s16
      // Predicated region
      $region53: #{tpu_custom_call.1} parent=5 // pred_check
        %p329 = pneg %p328
      $region54: #{tpu_custom_call.1} parent=5 // pred_check_branch
        %331 = sbr.rel (%p329) target = $region56
      $region55: #{tpu_custom_call.1} parent=5 // pred_region
        %s332 = ssub.s32 %s16, 2
        // Predicated region
        $region57: #{tpu_custom_call.1} parent=55 // pred_check
          %p333 = pneg %p132
        $region58: #{tpu_custom_call.1} parent=55 // pred_check_branch
          %335 = sbr.rel (%p333) target = $region60
        $region59: #{tpu_custom_call.1} parent=55 // pred_region
          %s336 = sand.u32 %s117, 1
          %s337 = scalar_lea.sflag [#allocation5], %s336
          %s338 = sand.u32 %s117, 1
          %s339 = smul.addr %s338, 8
          %s340 = scalar_lea.vmem [#allocation8], %s339
          %341 = dma.done %s337, 128
        $region60: #{tpu_custom_call.1} parent=55 // pred_fallthru
          _
      $region56: #{tpu_custom_call.1} parent=5 // pred_fallthru
        _
    $region6: #{tpu_custom_call.1} parent=1 // loop_footer
      %s20 = sadd.s32 1, %s16
    $region7: #{tpu_custom_call.1} parent=1 // loop_footer_branch
      %15 = sbr.rel target = $region3
    $region8: #{tpu_custom_call.1} parent=1 // loop_exit
      _
    %342 = vsyncpa [#allocation4], 1
    %s343 = scalar_lea.sflag [#allocation4], 1
    %344 = vsyncpa %s343, 1
    %345 = vsyncpa [#allocation7], 1
    %346 = vsyncpa [#allocation5], 1
    %s347 = scalar_lea.sflag [#allocation5], 1
    %348 = vsyncpa %s347, 1

</llo_original>
